<compile_context>
chip_gen: v5e
topology: v5e:2x2
jax: 0.10.0
libtpu: 0.0.40
codegen_flags: <defaults>
</compile_context>

<pallas_src>
import functools

import jax
import jax.numpy as jnp
from jax import lax
from jax.experimental import pallas as pl
from jax.experimental.pallas import tpu as pltpu


def _round_up(x, m):
    return (x + m - 1) // m * m


def _mdn_epilogue(acc, pi_ref, sig_ref, mu_ref, *, G, GO, pi_pad, sig_pad):
    """acc: (tb, pi_pad + sig_pad + mu_pad) f32; padded columns are exactly 0."""
    acc_pi = acc[:, :pi_pad]
    acc_sig = acc[:, pi_pad:pi_pad + sig_pad]
    acc_mu = acc[:, pi_pad + sig_pad:]

    # ---- pi: softmax over the first G columns of the pi block only.
    if G == pi_pad:
        logits = acc_pi
    else:
        col = lax.broadcasted_iota(jnp.int32, acc_pi.shape, 1)
        logits = jnp.where(col < G, acc_pi, -jnp.inf)
    m = jnp.max(logits, axis=-1, keepdims=True)
    e = jnp.exp(logits - m)                       # exp(-inf) == 0 on padding
    denom = jnp.sum(e, axis=-1, keepdims=True)
    pi_vals = e * (1.0 / denom)                   # exact recip on (tb,1) column

    # ---- sigma: elu(x) + 1 + 1e-5  ==  x > 0 ? x + 1 + 1e-5 : exp(x) + 1e-5
    x = acc_sig
    sigma_vals = jnp.where(x > 0.0,
                           x + (1.0 + 1e-5),
                           jnp.exp(jnp.minimum(x, 0.0)) + 1e-5)

    pi_ref[...] = pi_vals[:, :G].astype(pi_ref.dtype)
    sig_ref[...] = sigma_vals[:, :GO].astype(sig_ref.dtype)
    mu_ref[...] = acc_mu[:, :GO].astype(mu_ref.dtype)


def mdn_fused_kernel(h_ref, w_ref, b_ref, pi_ref, sig_ref, mu_ref, *maybe_acc,
                     G, GO, pi_pad, sig_pad, nk):
    # One fused MXU push per (batch-tile, K-tile): (tb, tk) @ (tk, n_pad) -> f32
    part = jnp.dot(h_ref[...], w_ref[...], preferred_element_type=jnp.float32)

    if nk == 1:
        # Weight slab fully resident: no accumulator scratch traffic needed.
        _mdn_epilogue(part + b_ref[...], pi_ref, sig_ref, mu_ref,
                      G=G, GO=GO, pi_pad=pi_pad, sig_pad=sig_pad)
    else:
        acc_ref = maybe_acc[0]
        k = pl.program_id(1)

        @pl.when(k == 0)
        def _():
            acc_ref[...] = part

        @pl.when(k > 0)
        def _():
            acc_ref[...] += part

        @pl.when(k == nk - 1)
        def _():
            _mdn_epilogue(acc_ref[...] + b_ref[...], pi_ref, sig_ref, mu_ref,
                          G=G, GO=GO, pi_pad=pi_pad, sig_pad=sig_pad)


def mdn_forward(h, wpi, bpi, wsig, bsig, wmu, bmu, num_gaussians, out_features):
    B, D = h.shape
    G, O = num_gaussians, out_features
    GO = G * O

    # Per-head 128-lane-aligned layout of the fused weight/bias slab.
    pi_pad = _round_up(G, 128)
    sig_pad = _round_up(GO, 128)
    mu_pad = _round_up(GO, 128)
    n_pad = pi_pad + sig_pad + mu_pad

    in_itemsize = jnp.dtype(h.dtype).itemsize
    w_itemsize = jnp.dtype(wpi.dtype).itemsize
    out_dtype = h.dtype
    out_itemsize = jnp.dtype(out_dtype).itemsize

    def pad_cols(a, width):
        return jnp.pad(a, ((0, 0), (0, width - a.shape[1])))

    w_fused = jnp.concatenate(
        [pad_cols(wpi, pi_pad), pad_cols(wsig, sig_pad), pad_cols(wmu, mu_pad)],
        axis=1)
    b_fused = jnp.concatenate(
        [pad_cols(bpi.astype(jnp.float32), pi_pad),
         pad_cols(bsig.astype(jnp.float32), sig_pad),
         pad_cols(bmu.astype(jnp.float32), mu_pad)],
        axis=1)

    # ---- chip-aware VMEM budget (v7x has 64 MiB physical, v5e/v6e 128 MiB) --
    try:
        phys_vmem = int(pltpu.get_tpu_info().vmem_capacity_bytes)
    except Exception:
        phys_vmem = 64 * 1024 * 1024            # conservative default (v7x)
    vmem_limit = min(phys_vmem * 3 // 4, 100 * 1024 * 1024)
    budget = vmem_limit - 2 * 1024 * 1024       # headroom for compiler scratch

    # ---- K (reduction) tiling: stream W when it cannot stay resident --------
    w_budget = budget // 2                       # resident W (double-buffered)
    if 2 * D * n_pad * w_itemsize <= w_budget:
        tk, d_pad = D, D
    else:
        tk = max(128, (w_budget // (2 * n_pad * w_itemsize)) // 128 * 128)
        tk = min(tk, _round_up(D, 128))
        d_pad = _round_up(D, tk)
        if d_pad != D:                           # zero-pad K so tiles divide D
            h = jnp.pad(h, ((0, 0), (0, d_pad - D)))
            w_fused = jnp.pad(w_fused, ((0, d_pad - D), (0, 0)))
    nk = d_pad // tk
    # TODO(synk): extremely wide heads (n_pad too large for even tk=128) would
    # additionally need N-tiling; not implemented here.

    # ---- batch tile: h (2x db) + f32 accumulator + outputs (2x db) + temps --
    per_row = (2 * tk * in_itemsize + n_pad * 4
               + 2 * (G + 2 * GO) * out_itemsize + 2 * n_pad * 4)
    avail = budget - 2 * tk * n_pad * w_itemsize - 2 * n_pad * 4
    tb = max(8, min(1024, avail // max(per_row, 1)))
    tb = max(8, (tb // 8) * 8)
    if B > 8:                                    # >=2 batch steps for megacore
        tb = min(tb, _round_up(pl.cdiv(B, 2), 8))
    tb = min(tb, _round_up(B, 8))
    nb = pl.cdiv(B, tb)

    grid = (nb, nk)

    cost = pl.CostEstimate(
        flops=2 * B * d_pad * n_pad,
        transcendentals=B * (pi_pad + sig_pad),
        bytes_accessed=(B * d_pad * in_itemsize + d_pad * n_pad * w_itemsize
                        + n_pad * 4 + B * (G + 2 * GO) * out_itemsize),
    )

    kernel = functools.partial(mdn_fused_kernel, G=G, GO=GO,
                               pi_pad=pi_pad, sig_pad=sig_pad, nk=nk)
    scratch_shapes = [pltpu.VMEM((tb, n_pad), jnp.float32)] if nk > 1 else []

    pi, sigma, mu = pl.pallas_call(
        kernel,
        grid=grid,
        in_specs=[
            pl.BlockSpec((tb, tk), lambda i, k: (i, k)),      # h tile (streamed)
            pl.BlockSpec((tk, n_pad), lambda i, k: (k, 0)),   # fused W
            pl.BlockSpec((1, n_pad), lambda i, k: (0, 0)),    # fused bias (f32)
        ],
        out_specs=(
            pl.BlockSpec((tb, G), lambda i, k: (i, 0)),
            pl.BlockSpec((tb, GO), lambda i, k: (i, 0)),
            pl.BlockSpec((tb, GO), lambda i, k: (i, 0)),
        ),
        out_shape=(
            jax.ShapeDtypeStruct((B, G), out_dtype),
            jax.ShapeDtypeStruct((B, GO), out_dtype),
            jax.ShapeDtypeStruct((B, GO), out_dtype),
        ),
        scratch_shapes=scratch_shapes,
        compiler_params=pltpu.CompilerParams(
            dimension_semantics=("parallel", "arbitrary"),
            vmem_limit_bytes=vmem_limit,
        ),
        cost_estimate=cost,
    )(h, w_fused, b_fused)

    return pi, sigma.reshape(B, G, O), mu.reshape(B, G, O)


def init_params(key, in_features, out_features, num_gaussians):
    """Deterministic synthetic parameters (PyTorch Linear-style uniform init)."""
    G, O, D = num_gaussians, out_features, in_features
    bound = 1.0 / (D ** 0.5)
    ks = jax.random.split(key, 6)
    u = lambda k, shape: jax.random.uniform(k, shape, jnp.float32, -bound, bound)
    wpi = u(ks[0], (D, G))
    bpi = u(ks[1], (1, G))
    wsig = u(ks[2], (D, G * O))
    bsig = u(ks[3], (1, G * O))
    wmu = u(ks[4], (D, G * O))
    bmu = u(ks[5], (1, G * O))
    return wpi, bpi, wsig, bsig, wmu, bmu


def mdn_reference(h, wpi, bpi, wsig, bsig, wmu, bmu, G, O):
    """Pure-JAX reference matching the PyTorch forward."""
    B = h.shape[0]
    pi = jax.nn.softmax(h @ wpi + bpi, axis=1)
    s = h @ wsig + bsig
    sigma = (jnp.where(s > 0, s, jnp.exp(s) - 1.0) + 1.0 + 1e-5).reshape(B, G, O)
    mu = (h @ wmu + bmu).reshape(B, G, O)
    return pi, sigma, mu


if __name__ == "__main__":
    key = jax.random.PRNGKey(0)
    k_h, k_p = jax.random.split(key)

    B, D = 8, 32          # batch, in_features
    G, O = 4, 8           # num_gaussians, out_features

    h = jax.random.normal(k_h, (B, D), jnp.float32)
    wpi, bpi, wsig, bsig, wmu, bmu = init_params(k_p, D, O, G)

    pi, sigma, mu = mdn_forward(h, wpi, bpi, wsig, bsig, wmu, bmu, G, O)
    jax.block_until_ready((pi, sigma, mu))

    # sanity check against pure-JAX reference (tolerance covers MXU f32
    # accumulation-order differences)
    pi_r, sigma_r, mu_r = mdn_reference(h, wpi, bpi, wsig, bsig, wmu, bmu, G, O)
    assert pi.shape == (B, G) and sigma.shape == (B, G, O) and mu.shape == (B, G, O)
    assert jnp.allclose(pi, pi_r, rtol=2e-3, atol=2e-3)
    assert jnp.allclose(sigma, sigma_r, rtol=2e-3, atol=2e-3)
    assert jnp.allclose(mu, mu_r, rtol=2e-3, atol=2e-3)

    print("KERNEL_OK")
</pallas_src>

<mosaic_0001>
module attributes {stable_mosaic.version = 11 : i64} {
  func.func @mdn_fused_kernel(%arg0: i32, %arg1: i32, %arg2: memref<8x32xf32, #tpu.memory_space<vmem>>, %arg3: memref<32x384xf32, #tpu.memory_space<vmem>>, %arg4: memref<1x384xf32, #tpu.memory_space<vmem>>, %arg5: memref<8x4xf32, #tpu.memory_space<vmem>>, %arg6: memref<8x32xf32, #tpu.memory_space<vmem>>, %arg7: memref<8x32xf32, #tpu.memory_space<vmem>>) attributes {dimension_semantics = [#tpu.dimension_semantics<parallel>, #tpu.dimension_semantics<arbitrary>], iteration_bounds = array<i64: 1, 1>, scalar_prefetch = 0 : i64, scratch_operands = 0 : i64, tpu.core_type = #tpu.core_type<tc>, window_params = [{transform_indices = @transform_0, window_bounds = array<i64: 8, 32>}, {transform_indices = @transform_1, window_bounds = array<i64: 32, 384>}, {pipeline_mode = #tpu.pipeline_mode<synchronous>, transform_indices = @transform_2, window_bounds = array<i64: 1, 384>}, {transform_indices = @transform_3, window_bounds = array<i64: 8, 4>}, {transform_indices = @transform_4, window_bounds = array<i64: 8, 32>}, {transform_indices = @transform_5, window_bounds = array<i64: 8, 32>}]} {
    %c0 = arith.constant 0 : index
    %c0_0 = arith.constant 0 : index
    %0 = vector.load %arg2[%c0, %c0_0] : memref<8x32xf32, #tpu.memory_space<vmem>>, vector<8x32xf32>
    %c0_1 = arith.constant 0 : index
    %c0_2 = arith.constant 0 : index
    %1 = vector.load %arg3[%c0_1, %c0_2] : memref<32x384xf32, #tpu.memory_space<vmem>>, vector<32x384xf32>
    %cst = arith.constant dense<0.000000e+00> : vector<8x384xf32>
    %2 = tpu.matmul %0, %1, %cst {dimension_numbers = #tpu.dot_dimension_numbers<[1], [0], [0], [1], [0, 0, 1, 1], [], []>} : vector<8x32xf32>, vector<32x384xf32>, vector<8x384xf32> -> vector<8x384xf32>
    %c0_3 = arith.constant 0 : index
    %c0_4 = arith.constant 0 : index
    %3 = vector.load %arg4[%c0_3, %c0_4] : memref<1x384xf32, #tpu.memory_space<vmem>>, vector<1x384xf32>
    %4 = vector.broadcast %3 : vector<1x384xf32> to vector<8x384xf32>
    %5 = arith.addf %2, %4 : vector<8x384xf32>
    %6 = vector.extract_strided_slice %5 {offsets = [0, 0], sizes = [8, 128], strides = [1, 1]} : vector<8x384xf32> to vector<8x128xf32>
    %7 = vector.extract_strided_slice %5 {offsets = [0, 128], sizes = [8, 128], strides = [1, 1]} : vector<8x384xf32> to vector<8x128xf32>
    %8 = vector.extract_strided_slice %5 {offsets = [0, 256], sizes = [8, 128], strides = [1, 1]} : vector<8x384xf32> to vector<8x128xf32>
    %9 = tpu.iota {dimensions = array<i32: 1>} : vector<8x128xi32>
    %c4_i32 = arith.constant 4 : i32
    %10 = vector.broadcast %c4_i32 : i32 to vector<8x128xi32>
    %11 = arith.cmpi slt, %9, %10 : vector<8x128xi32>
    %cst_5 = arith.constant 0xFF800000 : f32
    %12 = vector.broadcast %cst_5 : f32 to vector<8x128xf32>
    %13 = arith.select %11, %6, %12 : vector<8x128xi1>, vector<8x128xf32>
    %cst_6 = arith.constant dense<0xFF800000> : vector<8xf32>
    %14 = vector.multi_reduction <maximumf>, %13, %cst_6 [1] : vector<8x128xf32> to vector<8xf32>
    %15 = vector.shape_cast %14 : vector<8xf32> to vector<8x1xf32>
    %16 = vector.broadcast %15 : vector<8x1xf32> to vector<8x128xf32>
    %17 = arith.subf %13, %16 : vector<8x128xf32>
    %18 = math.exp %17 : vector<8x128xf32>
    %cst_7 = arith.constant dense<0.000000e+00> : vector<8xf32>
    %19 = vector.multi_reduction <add>, %18, %cst_7 [1] : vector<8x128xf32> to vector<8xf32>
    %20 = vector.shape_cast %19 : vector<8xf32> to vector<8x1xf32>
    %cst_8 = arith.constant 1.000000e+00 : f32
    %21 = vector.broadcast %cst_8 : f32 to vector<8x1xf32>
    %22 = arith.divf %21, %20 : vector<8x1xf32>
    %23 = vector.broadcast %22 : vector<8x1xf32> to vector<8x128xf32>
    %24 = arith.mulf %18, %23 : vector<8x128xf32>
    %cst_9 = arith.constant 0.000000e+00 : f32
    %25 = vector.broadcast %cst_9 : f32 to vector<8x128xf32>
    %26 = arith.cmpf ogt, %7, %25 : vector<8x128xf32>
    %cst_10 = arith.constant 1.000010e+00 : f32
    %27 = vector.broadcast %cst_10 : f32 to vector<8x128xf32>
    %28 = arith.addf %7, %27 : vector<8x128xf32>
    %cst_11 = arith.constant 0.000000e+00 : f32
    %29 = vector.broadcast %cst_11 : f32 to vector<8x128xf32>
    %30 = arith.minimumf %7, %29 : vector<8x128xf32>
    %31 = math.exp %30 : vector<8x128xf32>
    %cst_12 = arith.constant 9.99999974E-6 : f32
    %32 = vector.broadcast %cst_12 : f32 to vector<8x128xf32>
    %33 = arith.addf %31, %32 : vector<8x128xf32>
    %34 = arith.select %26, %28, %33 : vector<8x128xi1>, vector<8x128xf32>
    %35 = vector.extract_strided_slice %24 {offsets = [0, 0], sizes = [8, 4], strides = [1, 1]} : vector<8x128xf32> to vector<8x4xf32>
    %c0_13 = arith.constant 0 : index
    %c0_14 = arith.constant 0 : index
    %36 = vector.load %arg5[%c0_13, %c0_14] : memref<8x4xf32, #tpu.memory_space<vmem>>, vector<8x4xf32>
    tpu.vector_store %arg5[%c0_13, %c0_14], %35 {strides = array<i32>} : memref<8x4xf32, #tpu.memory_space<vmem>>, vector<8x4xf32>,
    %37 = vector.extract_strided_slice %34 {offsets = [0, 0], sizes = [8, 32], strides = [1, 1]} : vector<8x128xf32> to vector<8x32xf32>
    %c0_15 = arith.constant 0 : index
    %c0_16 = arith.constant 0 : index
    %38 = vector.load %arg6[%c0_15, %c0_16] : memref<8x32xf32, #tpu.memory_space<vmem>>, vector<8x32xf32>
    tpu.vector_store %arg6[%c0_15, %c0_16], %37 {strides = array<i32>} : memref<8x32xf32, #tpu.memory_space<vmem>>, vector<8x32xf32>,
    %39 = vector.extract_strided_slice %8 {offsets = [0, 0], sizes = [8, 32], strides = [1, 1]} : vector<8x128xf32> to vector<8x32xf32>
    %c0_17 = arith.constant 0 : index
    %c0_18 = arith.constant 0 : index
    %40 = vector.load %arg7[%c0_17, %c0_18] : memref<8x32xf32, #tpu.memory_space<vmem>>, vector<8x32xf32>
    tpu.vector_store %arg7[%c0_17, %c0_18], %39 {strides = array<i32>} : memref<8x32xf32, #tpu.memory_space<vmem>>, vector<8x32xf32>,
    return
  }
  func.func @transform_0(%arg0: i32, %arg1: i32) -> (i32, i32) {
    %c0_i32 = arith.constant 0 : i32
    return %arg0, %arg1 : i32, i32
  }
  func.func @transform_1(%arg0: i32, %arg1: i32) -> (i32, i32) {
    %c0_i32 = arith.constant 0 : i32
    %c0_i32_0 = arith.constant 0 : i32
    return %arg1, %c0_i32 : i32, i32
  }
  func.func @transform_2(%arg0: i32, %arg1: i32) -> (i32, i32) {
    %c0_i32 = arith.constant 0 : i32
    %c0_i32_0 = arith.constant 0 : i32
    %c0_i32_1 = arith.constant 0 : i32
    return %c0_i32, %c0_i32_0 : i32, i32
  }
  func.func @transform_3(%arg0: i32, %arg1: i32) -> (i32, i32) {
    %c0_i32 = arith.constant 0 : i32
    %c0_i32_0 = arith.constant 0 : i32
    return %arg0, %c0_i32 : i32, i32
  }
  func.func @transform_4(%arg0: i32, %arg1: i32) -> (i32, i32) {
    %c0_i32 = arith.constant 0 : i32
    %c0_i32_0 = arith.constant 0 : i32
    return %arg0, %c0_i32 : i32, i32
  }
  func.func @transform_5(%arg0: i32, %arg1: i32) -> (i32, i32) {
    %c0_i32 = arith.constant 0 : i32
    %c0_i32_0 = arith.constant 0 : i32
    return %arg0, %c0_i32 : i32, i32
  }
}

</mosaic_0001>

<llo_original>
// kernel: tpu_custom_call.1
$region0: #{tpu_custom_call.1}
  #allocation0 [shape = 'u32[]', space=smem, size = 0x4, offset = 0x4, fixed_abs, tag = 'smem constant byte address 0x4 - core index']
  #allocation1 [shape = 'u32[72,128]{1,0:T(1,128)}', space=vmem, size = 0x9000, scoped, tag = 'internal scratch']
  %s0 = inlined_call_operand.hbm [shape: f32[8,32], index: 0, kind: input, shape index: {}]
  %s1 = inlined_call_operand.hbm [shape: f32[32,384], index: 1, kind: input, shape index: {}]
  %s2 = inlined_call_operand.hbm [shape: f32[1,384], index: 2, kind: input, shape index: {}]
  %s3 = inlined_call_operand.vmem [shape: f32[8,4], index: 3, kind: output, shape index: {0}]
  %s4 = inlined_call_operand.hbm [shape: f32[8,32], index: 4, kind: output, shape index: {1}]
  %s5 = inlined_call_operand.hbm [shape: f32[8,32], index: 5, kind: output, shape index: {2}]
  %6 = xla_tuple %s3, %s4, %s5
  %s7 = sld [smem:[#allocation0]]
  $region50: #{tpu_custom_call.1} parent=0
    _
  %s9 = ssub.s32 1, %s7
  %s10 = scalar_select 0, %s9, %s7
  $region1: #{tpu_custom_call.1} parent=0
    #allocation2 [shape = 'u8[4096]{0}', space=vmem, size = 0x1000, scoped, tag = 'input window, operand 0, single buffered']
    #allocation3 [shape = 's32[1]{0}', space=sflag, size = 0x4, scoped, tag = 'scoped memory for tpu_custom_call.1']
    #allocation4 [shape = 's32[1]{0}', space=sflag, size = 0x4, scoped, tag = 'scoped memory for tpu_custom_call.1']
    #allocation5 [shape = 'u8[49152]{0}', space=vmem, size = 0xc000, scoped, tag = 'input window, operand 1, single buffered']
    #allocation6 [shape = 's32[1]{0}', space=sflag, size = 0x4, scoped, tag = 'scoped memory for tpu_custom_call.1']
    #allocation7 [shape = 'u8[1536]{0}', space=vmem, size = 0x800, scoped, tag = 'input window, operand 2, single buffered']
    #allocation8 [shape = 'u8[4096]{0}', space=vmem, size = 0x1000, scoped, tag = 'output window, operand 1, single buffered']
    #allocation9 [shape = 'u8[4096]{0}', space=vmem, size = 0x1000, scoped, tag = 'output window, operand 2, single buffered']
    #allocation10 [shape = 's32[1]{0}', space=sflag, size = 0x4, scoped, tag = 'scoped memory for tpu_custom_call.1']
    %11 = vsyncpa [#allocation3], 0
    %12 = vsyncpa [#allocation6], 0
    %13 = vsyncpa [#allocation4], 0
    %14 = vsyncpa [#allocation10], 0
    // Predicated region
    $region2: #{tpu_custom_call.1} parent=1 // pred_check
      _
    $region3: #{tpu_custom_call.1} parent=1 // pred_check_branch
      %16 = sbr.rel (0) target = $region5
    $region4: #{tpu_custom_call.1} parent=1 // pred_region
      %18 = vsyncadd [#allocation3], 0
      %s20 = sshll.u32 %s0, 4
      %s21 = int_to_ptr.hbm [resolvable:$true] %s20
      %s22 = sshll.u32 [#allocation2], 4
      %s23 = int_to_ptr.vmem [resolvable:$true] %s22
      %25 = dma.hbm_to_vmem [thread:$0]  %s21, 128, %s23, [#allocation3]
    $region5: #{tpu_custom_call.1} parent=1 // pred_fallthru
      _
    // Predicated region
    $region6: #{tpu_custom_call.1} parent=1 // pred_check
      _
    $region7: #{tpu_custom_call.1} parent=1 // pred_check_branch
      %27 = sbr.rel (0) target = $region9
    $region8: #{tpu_custom_call.1} parent=1 // pred_region
      %29 = vsyncadd [#allocation6], 0
      %s30 = sshll.u32 %s1, 4
      %s31 = int_to_ptr.hbm [resolvable:$true] %s30
      %s32 = sshll.u32 [#allocation5], 4
      %s33 = int_to_ptr.vmem [resolvable:$true] %s32
      %38 = dma.hbm_to_vmem [thread:$0]  %s31, 1536, %s33, [#allocation6], 384, 384, 24
    $region9: #{tpu_custom_call.1} parent=1 // pred_fallthru
      _
    // Predicated region
    $region10: #{tpu_custom_call.1} parent=1 // pred_check
      _
    $region11: #{tpu_custom_call.1} parent=1 // pred_check_branch
      %40 = sbr.rel (0) target = $region13
    $region12: #{tpu_custom_call.1} parent=1 // pred_region
      %42 = vsyncadd [#allocation6], 0
      %s44 = sshll.u32 %s2, 4
      %s45 = int_to_ptr.hbm [resolvable:$true] %s44
      %s46 = sshll.u32 [#allocation7], 4
      %s47 = int_to_ptr.vmem [resolvable:$true] %s46
      %49 = dma.hbm_to_vmem [thread:$0]  %s45, 48, %s47, [#allocation6]
    $region13: #{tpu_custom_call.1} parent=1 // pred_fallthru
      _
    // Predicated region
    $region14: #{tpu_custom_call.1} parent=1 // pred_check
      _
    $region15: #{tpu_custom_call.1} parent=1 // pred_check_branch
      %51 = sbr.rel (0) target = $region17
    $region16: #{tpu_custom_call.1} parent=1 // pred_region
      %53 = dma.done [#allocation3], 128
    $region17: #{tpu_custom_call.1} parent=1 // pred_fallthru
      _
    // Predicated region
    $region18: #{tpu_custom_call.1} parent=1 // pred_check
      _
    $region19: #{tpu_custom_call.1} parent=1 // pred_check_branch
      %55 = sbr.rel (0) target = $region21
    $region20: #{tpu_custom_call.1} parent=1 // pred_region
      %57 = dma.done [#allocation6], 1536
    $region21: #{tpu_custom_call.1} parent=1 // pred_fallthru
      _
    // Predicated region
    $region22: #{tpu_custom_call.1} parent=1 // pred_check
      _
    $region23: #{tpu_custom_call.1} parent=1 // pred_check_branch
      %59 = sbr.rel (0) target = $region25
    $region24: #{tpu_custom_call.1} parent=1 // pred_region
      %61 = dma.done [#allocation6], 48
    $region25: #{tpu_custom_call.1} parent=1 // pred_fallthru
      _
    %v62 = vld [vmem:[#allocation2] sm:$0xff]
    %v63 = vld [vmem:[#allocation5] sm:$0xff]
    %v64 = vld [vmem:[#allocation5 + $0x8] sm:$0xff]
    %v65 = vld [vmem:[#allocation5 + $0x10] sm:$0xff]
    %v66 = vld [vmem:[#allocation5 + $0x18] sm:$0xff]
    %v67 = vld [vmem:[#allocation5 + $0x20] sm:$0xff]
    %v68 = vld [vmem:[#allocation5 + $0x28] sm:$0xff]
    %v69 = vld [vmem:[#allocation5 + $0x30] sm:$0xff]
    %v70 = vld [vmem:[#allocation5 + $0x38] sm:$0xff]
    %v71 = vld [vmem:[#allocation5 + $0x40] sm:$0xff]
    %v72 = vld [vmem:[#allocation5 + $0x48] sm:$0xff]
    %v73 = vld [vmem:[#allocation5 + $0x50] sm:$0xff]
    %v74 = vld [vmem:[#allocation5 + $0x58] sm:$0xff]
    %v75 = vld [vmem:[#allocation7] sm:$0x7]
    %v77 = vperm.slane %v75, 0
    %v78 = vperm.slane %v75, 1
    %v79 = vperm.slane %v75, 2
    %vm83 = vcmask 261120
    %v85 = vsel %vm83, %v62, 0
    %87 = vmatpush.msra.mxu0 0.0
    %88 = vmatpush.msra.mxu0 0.0
    %89 = vmatpush.msra.mxu0 0.0
    %90 = vmatpush.msra.mxu0 0.0
    %91 = vmatpush.msra.mxu0 0.0
    %92 = vmatpush.msra.mxu0 0.0
    %93 = vmatpush.msra.mxu0 0.0
    %94 = vmatpush.msra.mxu0 0.0
    %95 = vmatpush.msra.mxu0 0.0
    %96 = vmatpush.msra.mxu0 0.0
    %97 = vmatpush.msra.mxu0 0.0
    %98 = vmatpush.msra.mxu0 0.0
    %99 = vmatpush.msra.mxu0 %v72
    %100 = vmatpush.msra.mxu0 %v69
    %101 = vmatpush.msra.mxu0 %v66
    %102 = vmatpush.msra.mxu0 %v63
    %103 = vmatmul.f32.gmra.mxu0 %v85
    %v104 = vpop.f32.mrf.mxu0
    %v105 = vadd.f32 %v77, %v104
    %106 = vdwg.mxu0
    %107 = vmatpush.msra.mxu0 0.0
    %108 = vmatpush.msra.mxu0 0.0
    %109 = vmatpush.msra.mxu0 0.0
    %110 = vmatpush.msra.mxu0 0.0
    %111 = vmatpush.msra.mxu0 0.0
    %112 = vmatpush.msra.mxu0 0.0
    %113 = vmatpush.msra.mxu0 0.0
    %114 = vmatpush.msra.mxu0 0.0
    %115 = vmatpush.msra.mxu0 0.0
    %116 = vmatpush.msra.mxu0 0.0
    %117 = vmatpush.msra.mxu0 0.0
    %118 = vmatpush.msra.mxu0 0.0
    %119 = vmatpush.msra.mxu0 %v73
    %120 = vmatpush.msra.mxu0 %v70
    %121 = vmatpush.msra.mxu0 %v67
    %122 = vmatpush.msra.mxu0 %v64
    %123 = vmatmul.f32.gmra.mxu0 %v85
    %v124 = vpop.f32.mrf.mxu0
    %v125 = vadd.f32 %v78, %v124
    %126 = vdwg.mxu0
    %127 = vmatpush.msra.mxu0 0.0
    %128 = vmatpush.msra.mxu0 0.0
    %129 = vmatpush.msra.mxu0 0.0
    %130 = vmatpush.msra.mxu0 0.0
    %131 = vmatpush.msra.mxu0 0.0
    %132 = vmatpush.msra.mxu0 0.0
    %133 = vmatpush.msra.mxu0 0.0
    %134 = vmatpush.msra.mxu0 0.0
    %135 = vmatpush.msra.mxu0 0.0
    %136 = vmatpush.msra.mxu0 0.0
    %137 = vmatpush.msra.mxu0 0.0
    %138 = vmatpush.msra.mxu0 0.0
    %139 = vmatpush.msra.mxu0 %v74
    %140 = vmatpush.msra.mxu0 %v71
    %141 = vmatpush.msra.mxu0 %v68
    %142 = vmatpush.msra.mxu0 %v65
    %143 = vmatmul.f32.gmra.mxu0 %v85
    %v144 = vpop.f32.mrf.mxu0
    %v145 = vadd.f32 %v79, %v144
    %146 = vdwg.mxu0
    %v147 = vlaneseq
    %v148 = vand.u32 %v147, 127
    %vm149 = vcmp.lt.s32.totalorder %v148, 4
    %v150 = vsel %vm149, %v105, -inf
    %151 = vmax.xlane.f32.xlu0 %v150
    %v152 = vpop.xlane.xlu0 %151
    %v153 = vsub.f32 %v150, %v152
    %v154 = vmul.f32 %v153, 1.442695
    %v155 = vpow.pop %v154
    %156 = vadd.xlane.f32.xlu0 %v155
    %v157 = vpop.xlane.xlu0 %156
    %v158 = vrcp.pop %v157
    %v159 = vmul.f32 %v157, %v158
    %v160 = vsub.f32 1.0, %v159
    %v161 = vmul.f32 %v158, %v160
    %v162 = vadd.f32 %v158, %v161
    %vm163 = vweird.f32 %v157
    %vm164 = vweird.f32 %v158
    %vm165 = vmor %vm163, %vm164
    %v166 = vsel %vm165, %v158, %v162
    %v167 = vand.u32 2147483647, %v157
    %vm168 = vcmp.eq.f32.partialorder %v167, 8.507059e+37
    %v169 = vand.u32 %v157, 2147483648
    %v170 = vor.u32 1.1754944e-38, %v169
    %v171 = vsel %vm168, %v170, %v166
    %v172 = vmul.f32 1.0, %v171
    %v173 = vmul.f32 %v155, %v172
    %vm174 = vcmp.gt.f32.partialorder %v125, 0.0
    %v175 = vadd.f32 %v125, 1.00001
    %v176 = vmin.f32 %v125, 0.0
    %v177 = vmul.f32 %v176, 1.442695
    %v178 = vpow.pop %v177
    %v179 = vadd.f32 %v178, 1e-05
    %v180 = vsel %vm174, %v175, %v179
    %vm181 = vcmask 31744
    %182 = vst.msk [vmem:[%s3] sm:$0xff] %vm181, %v173
    %183 = vst.msk [vmem:[#allocation8] sm:$0xff] %vm83, %v180
    %184 = vst.msk [vmem:[#allocation9] sm:$0xff] %vm83, %v145
    // Predicated region
    $region26: #{tpu_custom_call.1} parent=1 // pred_check
      _
    $region27: #{tpu_custom_call.1} parent=1 // pred_check_branch
      %186 = sbr.rel (0) target = $region29
    $region28: #{tpu_custom_call.1} parent=1 // pred_region
      _
    $region29: #{tpu_custom_call.1} parent=1 // pred_fallthru
      _
    // Predicated region
    $region30: #{tpu_custom_call.1} parent=1 // pred_check
      _
    $region31: #{tpu_custom_call.1} parent=1 // pred_check_branch
      %188 = sbr.rel (0) target = $region33
    $region32: #{tpu_custom_call.1} parent=1 // pred_region
      %190 = vsyncadd [#allocation4], 0
      %s192 = sshll.u32 [#allocation8], 4
      %s193 = int_to_ptr.vmem [resolvable:$true] %s192
      %s194 = sshll.u32 %s4, 4
      %s195 = int_to_ptr.hbm [resolvable:$true] %s194
      %197 = dma.vmem_to_hbm [thread:$0]  %s193, 128, %s195, [#allocation4]
    $region33: #{tpu_custom_call.1} parent=1 // pred_fallthru
      _
    // Predicated region
    $region34: #{tpu_custom_call.1} parent=1 // pred_check
      _
    $region35: #{tpu_custom_call.1} parent=1 // pred_check_branch
      %199 = sbr.rel (0) target = $region37
    $region36: #{tpu_custom_call.1} parent=1 // pred_region
      %201 = vsyncadd [#allocation10], 0
      %s203 = sshll.u32 [#allocation9], 4
      %s204 = int_to_ptr.vmem [resolvable:$true] %s203
      %s205 = sshll.u32 %s5, 4
      %s206 = int_to_ptr.hbm [resolvable:$true] %s205
      %208 = dma.vmem_to_hbm [thread:$0]  %s204, 128, %s206, [#allocation10]
    $region37: #{tpu_custom_call.1} parent=1 // pred_fallthru
      _
    // Predicated region
    $region38: #{tpu_custom_call.1} parent=1 // pred_check
      _
    $region39: #{tpu_custom_call.1} parent=1 // pred_check_branch
      %210 = sbr.rel (0) target = $region41
    $region40: #{tpu_custom_call.1} parent=1 // pred_region
      _
    $region41: #{tpu_custom_call.1} parent=1 // pred_fallthru
      _
    // Predicated region
    $region42: #{tpu_custom_call.1} parent=1 // pred_check
      _
    $region43: #{tpu_custom_call.1} parent=1 // pred_check_branch
      %212 = sbr.rel (0) target = $region45
    $region44: #{tpu_custom_call.1} parent=1 // pred_region
      %214 = dma.done [#allocation4], 128
    $region45: #{tpu_custom_call.1} parent=1 // pred_fallthru
      _
    // Predicated region
    $region46: #{tpu_custom_call.1} parent=1 // pred_check
      _
    $region47: #{tpu_custom_call.1} parent=1 // pred_check_branch
      %216 = sbr.rel (0) target = $region49
    $region48: #{tpu_custom_call.1} parent=1 // pred_region
      %218 = dma.done [#allocation10], 128
    $region49: #{tpu_custom_call.1} parent=1 // pred_fallthru
      _
    %219 = vsyncpa [#allocation3], 1
    %220 = vsyncpa [#allocation6], 1
    %221 = vsyncpa [#allocation4], 1
    %222 = vsyncpa [#allocation10], 1

</llo_original>
